<compile_context>
chip_gen: v6e
topology: v6e:2x2x1
jax: 0.10.0
libtpu: 0.0.40
codegen_flags: <defaults>
</compile_context>

<pallas_src>
import jax
import jax.numpy as jnp
from jax.experimental import pallas as pl
from jax.experimental.pallas import tpu as pltpu

_LANE = 128


def att_layer_kernel(x_ref, w1_ref, b1_ref, w2_ref, b2_ref,
                     wm_ref, bm_ref, wa_ref, ba_ref, mul_ref, add_ref):
    # Hoist the (tiny) weight / bias loads out of the batch-pack loop.
    w1 = w1_ref[...]; b1 = b1_ref[...]
    w2 = w2_ref[...]; b2 = b2_ref[...]
    wm = wm_ref[...]; bm = bm_ref[...]
    wa = wa_ref[...]; ba = ba_ref[...]

    nb = x_ref.shape[0]                       # static batch-pack factor (<= 8)
    for b in range(nb):
        x = x_ref[b]                          # (Cin, TP)

        # conv1 (1x1) + LeakyReLU(0.2)
        f1 = jnp.dot(w1, x, preferred_element_type=jnp.float32) + b1
        f1 = jnp.where(f1 > 0, f1, 0.2 * f1)

        # conv2 (1x1) + LeakyReLU(0.2)
        f2 = jnp.dot(w2, f1, preferred_element_type=jnp.float32) + b2
        f2 = jnp.where(f2 > 0, f2, 0.2 * f2)

        # mul_conv / add_conv (1x1): write each output ref directly
        # (no fused staging buffer).  NOTE: forward() does NOT apply sigmoid.
        mul_ref[b] = (jnp.dot(wm, f2, preferred_element_type=jnp.float32)
                      + bm).astype(mul_ref.dtype)
        add_ref[b] = (jnp.dot(wa, f2, preferred_element_type=jnp.float32)
                      + ba).astype(add_ref.dtype)


def _largest_divisor_leq(n, cap):
    for d in range(min(n, cap), 0, -1):
        if n % d == 0:
            return d
    return 1


def att_layer_pallas(x_nchw, params, *, tile_pixels=8192):
    """x_nchw: (N, Cin, H, W) float32.  Returns (mul, add), each (N, out_chn, H, W).

    tile_pixels: pixels per grid step (rounded to a 128 multiple).  8192 fits the
    default scoped-VMEM budget on v5e/v6e/v7x; raise to 16384 on v6e/v7x for
    slightly better per-step amortization (add vmem_limit_bytes on v5e).
    """
    w1, b1, w2, b2, wm, bm, wa, ba = params
    N, Cin, H, W = x_nchw.shape
    nf1, nf2, out_chn = w1.shape[0], w2.shape[0], wm.shape[0]
    HW = H * W

    # Free reshape: pixels land on lanes, channels on sublanes. No transposes.
    x3 = x_nchw.reshape(N, Cin, HW)

    tile_pixels = max(_LANE, (int(tile_pixels) // _LANE) * _LANE)
    hw_lane = ((HW + _LANE - 1) // _LANE) * _LANE     # HW rounded up to lanes

    if hw_lane <= tile_pixels:
        # Small image: one (lane-aligned) pixel tile, pack batch elements to
        # keep per-step DMAs from degenerating.
        tp = hw_lane
        nb = _largest_divisor_leq(N, max(1, min(8, tile_pixels // tp)))
        grid_p = 1
    else:
        # Large image: 128-aligned pixel tiles; a ragged last tile (if HW is
        # not a multiple of tp) is masked by Pallas -- no pad, no output slice.
        tp = tile_pixels
        nb = 1
        grid_p = pl.cdiv(HW, tp)
    grid = (N // nb, grid_p)

    # Biases as lane-broadcast columns.
    b1c = b1.reshape(nf1, 1)
    b2c = b2.reshape(nf2, 1)
    bmc = bm.reshape(out_chn, 1)
    bac = ba.reshape(out_chn, 1)

    xmap = lambda n, p: (n, 0, p)          # batch-pack x pixel tiles
    wmap = lambda n, p: (0, 0)             # small weights/biases resident

    # TODO(synk): if the consumer tolerates bf16, emit the outputs as bfloat16
    # (halves HBM write traffic, which dominates this kernel).
    mul3, add3 = pl.pallas_call(
        att_layer_kernel,
        out_shape=(
            jax.ShapeDtypeStruct((N, out_chn, HW), jnp.float32),
            jax.ShapeDtypeStruct((N, out_chn, HW), jnp.float32),
        ),
        grid_spec=pltpu.PrefetchScalarGridSpec(
            num_scalar_prefetch=0,
            grid=grid,
            in_specs=[
                pl.BlockSpec((nb, Cin, tp), xmap),        # x   (Nb, Cin, tp)
                pl.BlockSpec((nf1, Cin), wmap),           # w1
                pl.BlockSpec((nf1, 1), wmap),             # b1
                pl.BlockSpec((nf2, nf1), wmap),           # w2
                pl.BlockSpec((nf2, 1), wmap),             # b2
                pl.BlockSpec((out_chn, nf2), wmap),       # w_mul
                pl.BlockSpec((out_chn, 1), wmap),         # b_mul
                pl.BlockSpec((out_chn, nf2), wmap),       # w_add
                pl.BlockSpec((out_chn, 1), wmap),         # b_add
            ],
            out_specs=[
                pl.BlockSpec((nb, out_chn, tp), xmap),    # mul (Nb, out_chn, tp)
                pl.BlockSpec((nb, out_chn, tp), xmap),    # add (Nb, out_chn, tp)
            ],
        ),
        compiler_params=pltpu.CompilerParams(
            dimension_semantics=("parallel", "parallel")),
    )(x3, w1, b1c, w2, b2c, wm, bmc, wa, bac)

    # (N, out_chn, H*W) -> NCHW: pure reshape, no transpose, no slice.
    return mul3.reshape(N, out_chn, H, W), add3.reshape(N, out_chn, H, W)


def init_params(key, out_chn=32, extra_chn=3):
    """Deterministic synthetic weights matching the nn.Conv2d shapes (k=1)."""
    nf1 = out_chn // 8
    nf2 = out_chn // 4
    ks = jax.random.split(key, 8)

    def mk(k, o, i, scale):
        return (scale * jax.random.normal(k, (o, i))).astype(jnp.float32)

    w1 = mk(ks[0], nf1, extra_chn, 0.3)
    b1 = (0.1 * jax.random.normal(ks[1], (nf1,))).astype(jnp.float32)
    w2 = mk(ks[2], nf2, nf1, 0.3)
    b2 = (0.1 * jax.random.normal(ks[3], (nf2,))).astype(jnp.float32)
    wm = mk(ks[4], out_chn, nf2, 0.3)
    bm = (0.1 * jax.random.normal(ks[5], (out_chn,))).astype(jnp.float32)
    wa = mk(ks[6], out_chn, nf2, 0.3)
    ba = (0.1 * jax.random.normal(ks[7], (out_chn,))).astype(jnp.float32)
    return (w1, b1, w2, b2, wm, bm, wa, ba)


def att_layer_ref(x_nchw, params):
    """Pure-JAX reference (per-pixel matmuls == 1x1 convs), NCHW in/out."""
    w1, b1, w2, b2, wm, bm, wa, ba = params
    leaky = lambda v: jnp.where(v > 0, v, 0.2 * v)
    f1 = leaky(jnp.einsum('oc,nchw->nohw', w1, x_nchw) + b1[None, :, None, None])
    f2 = leaky(jnp.einsum('oc,nchw->nohw', w2, f1) + b2[None, :, None, None])
    mul = jnp.einsum('oc,nchw->nohw', wm, f2) + bm[None, :, None, None]
    add = jnp.einsum('oc,nchw->nohw', wa, f2) + ba[None, :, None, None]
    return mul, add


if __name__ == "__main__":
    key = jax.random.PRNGKey(0)
    k_x, k_p = jax.random.split(key)

    out_chn, extra_chn = 32, 3
    N, H, W = 2, 16, 16
    x = jax.random.normal(k_x, (N, extra_chn, H, W), dtype=jnp.float32)
    params = init_params(k_p, out_chn=out_chn, extra_chn=extra_chn)

    mul, add = att_layer_pallas(x, params)
    mul, add = jax.block_until_ready((mul, add))

    mul_ref, add_ref = att_layer_ref(x, params)
    assert mul.shape == (N, out_chn, H, W) and add.shape == (N, out_chn, H, W)
    assert jnp.allclose(mul, mul_ref, atol=1e-4, rtol=1e-4)
    assert jnp.allclose(add, add_ref, atol=1e-4, rtol=1e-4)

    print("KERNEL_OK")
</pallas_src>

<mosaic_0001>
module attributes {stable_mosaic.version = 11 : i64} {
  func.func @att_layer_kernel(%arg0: i32, %arg1: i32, %arg2: memref<2x3x256xf32, #tpu.memory_space<vmem>>, %arg3: memref<4x3xf32, #tpu.memory_space<vmem>>, %arg4: memref<4x1xf32, #tpu.memory_space<vmem>>, %arg5: memref<8x4xf32, #tpu.memory_space<vmem>>, %arg6: memref<8x1xf32, #tpu.memory_space<vmem>>, %arg7: memref<32x8xf32, #tpu.memory_space<vmem>>, %arg8: memref<32x1xf32, #tpu.memory_space<vmem>>, %arg9: memref<32x8xf32, #tpu.memory_space<vmem>>, %arg10: memref<32x1xf32, #tpu.memory_space<vmem>>, %arg11: memref<2x32x256xf32, #tpu.memory_space<vmem>>, %arg12: memref<2x32x256xf32, #tpu.memory_space<vmem>>) attributes {dimension_semantics = [#tpu.dimension_semantics<parallel>, #tpu.dimension_semantics<parallel>], iteration_bounds = array<i64: 1, 1>, scalar_prefetch = 0 : i64, scratch_operands = 0 : i64, tpu.core_type = #tpu.core_type<tc>, window_params = [{transform_indices = @transform_0, window_bounds = array<i64: 2, 3, 256>}, {pipeline_mode = #tpu.pipeline_mode<synchronous>, transform_indices = @transform_1, window_bounds = array<i64: 4, 3>}, {pipeline_mode = #tpu.pipeline_mode<synchronous>, transform_indices = @transform_2, window_bounds = array<i64: 4, 1>}, {pipeline_mode = #tpu.pipeline_mode<synchronous>, transform_indices = @transform_3, window_bounds = array<i64: 8, 4>}, {pipeline_mode = #tpu.pipeline_mode<synchronous>, transform_indices = @transform_4, window_bounds = array<i64: 8, 1>}, {pipeline_mode = #tpu.pipeline_mode<synchronous>, transform_indices = @transform_5, window_bounds = array<i64: 32, 8>}, {pipeline_mode = #tpu.pipeline_mode<synchronous>, transform_indices = @transform_6, window_bounds = array<i64: 32, 1>}, {pipeline_mode = #tpu.pipeline_mode<synchronous>, transform_indices = @transform_7, window_bounds = array<i64: 32, 8>}, {pipeline_mode = #tpu.pipeline_mode<synchronous>, transform_indices = @transform_8, window_bounds = array<i64: 32, 1>}, {transform_indices = @transform_9, window_bounds = array<i64: 2, 32, 256>}, {transform_indices = @transform_10, window_bounds = array<i64: 2, 32, 256>}]} {
    %c0 = arith.constant 0 : index
    %c0_0 = arith.constant 0 : index
    %0 = vector.load %arg3[%c0, %c0_0] : memref<4x3xf32, #tpu.memory_space<vmem>>, vector<4x3xf32>
    %c0_1 = arith.constant 0 : index
    %c0_2 = arith.constant 0 : index
    %1 = vector.load %arg4[%c0_1, %c0_2] : memref<4x1xf32, #tpu.memory_space<vmem>>, vector<4x1xf32>
    %c0_3 = arith.constant 0 : index
    %c0_4 = arith.constant 0 : index
    %2 = vector.load %arg5[%c0_3, %c0_4] : memref<8x4xf32, #tpu.memory_space<vmem>>, vector<8x4xf32>
    %c0_5 = arith.constant 0 : index
    %c0_6 = arith.constant 0 : index
    %3 = vector.load %arg6[%c0_5, %c0_6] : memref<8x1xf32, #tpu.memory_space<vmem>>, vector<8x1xf32>
    %c0_7 = arith.constant 0 : index
    %c0_8 = arith.constant 0 : index
    %4 = vector.load %arg7[%c0_7, %c0_8] : memref<32x8xf32, #tpu.memory_space<vmem>>, vector<32x8xf32>
    %c0_9 = arith.constant 0 : index
    %c0_10 = arith.constant 0 : index
    %5 = vector.load %arg8[%c0_9, %c0_10] : memref<32x1xf32, #tpu.memory_space<vmem>>, vector<32x1xf32>
    %c0_11 = arith.constant 0 : index
    %c0_12 = arith.constant 0 : index
    %6 = vector.load %arg9[%c0_11, %c0_12] : memref<32x8xf32, #tpu.memory_space<vmem>>, vector<32x8xf32>
    %c0_13 = arith.constant 0 : index
    %c0_14 = arith.constant 0 : index
    %7 = vector.load %arg10[%c0_13, %c0_14] : memref<32x1xf32, #tpu.memory_space<vmem>>, vector<32x1xf32>
    %c0_15 = arith.constant 0 : index
    %c0_16 = arith.constant 0 : index
    %c0_17 = arith.constant 0 : index
    %8 = vector.load %arg2[%c0_15, %c0_16, %c0_17] : memref<2x3x256xf32, #tpu.memory_space<vmem>>, vector<1x3x256xf32>
    %9 = vector.shape_cast %8 : vector<1x3x256xf32> to vector<3x256xf32>
    %cst = arith.constant dense<0.000000e+00> : vector<4x256xf32>
    %10 = tpu.matmul %0, %9, %cst {dimension_numbers = #tpu.dot_dimension_numbers<[1], [0], [0], [1], [0, 0, 1, 1], [], []>} : vector<4x3xf32>, vector<3x256xf32>, vector<4x256xf32> -> vector<4x256xf32>
    %11 = vector.broadcast %1 : vector<4x1xf32> to vector<4x256xf32>
    %12 = arith.addf %10, %11 : vector<4x256xf32>
    %cst_18 = arith.constant 0.000000e+00 : f32
    %13 = vector.broadcast %cst_18 : f32 to vector<4x256xf32>
    %14 = arith.cmpf ogt, %12, %13 : vector<4x256xf32>
    %cst_19 = arith.constant 2.000000e-01 : f32
    %15 = vector.broadcast %cst_19 : f32 to vector<4x256xf32>
    %16 = arith.mulf %15, %12 : vector<4x256xf32>
    %17 = arith.select %14, %12, %16 : vector<4x256xi1>, vector<4x256xf32>
    %cst_20 = arith.constant dense<0.000000e+00> : vector<8x256xf32>
    %18 = tpu.matmul %2, %17, %cst_20 {dimension_numbers = #tpu.dot_dimension_numbers<[1], [0], [0], [1], [0, 0, 1, 1], [], []>} : vector<8x4xf32>, vector<4x256xf32>, vector<8x256xf32> -> vector<8x256xf32>
    %19 = vector.broadcast %3 : vector<8x1xf32> to vector<8x256xf32>
    %20 = arith.addf %18, %19 : vector<8x256xf32>
    %cst_21 = arith.constant 0.000000e+00 : f32
    %21 = vector.broadcast %cst_21 : f32 to vector<8x256xf32>
    %22 = arith.cmpf ogt, %20, %21 : vector<8x256xf32>
    %cst_22 = arith.constant 2.000000e-01 : f32
    %23 = vector.broadcast %cst_22 : f32 to vector<8x256xf32>
    %24 = arith.mulf %23, %20 : vector<8x256xf32>
    %25 = arith.select %22, %20, %24 : vector<8x256xi1>, vector<8x256xf32>
    %cst_23 = arith.constant dense<0.000000e+00> : vector<32x256xf32>
    %26 = tpu.matmul %4, %25, %cst_23 {dimension_numbers = #tpu.dot_dimension_numbers<[1], [0], [0], [1], [0, 0, 1, 1], [], []>} : vector<32x8xf32>, vector<8x256xf32>, vector<32x256xf32> -> vector<32x256xf32>
    %27 = vector.broadcast %5 : vector<32x1xf32> to vector<32x256xf32>
    %28 = arith.addf %26, %27 : vector<32x256xf32>
    %c0_24 = arith.constant 0 : index
    %c0_25 = arith.constant 0 : index
    %c0_26 = arith.constant 0 : index
    %29 = vector.load %arg11[%c0_24, %c0_25, %c0_26] : memref<2x32x256xf32, #tpu.memory_space<vmem>>, vector<1x32x256xf32>
    %30 = vector.shape_cast %29 : vector<1x32x256xf32> to vector<32x256xf32>
    %31 = vector.shape_cast %28 : vector<32x256xf32> to vector<1x32x256xf32>
    tpu.vector_store %arg11[%c0_24, %c0_25, %c0_26], %31 {strides = array<i32>} : memref<2x32x256xf32, #tpu.memory_space<vmem>>, vector<1x32x256xf32>,
    %cst_27 = arith.constant dense<0.000000e+00> : vector<32x256xf32>
    %32 = tpu.matmul %6, %25, %cst_27 {dimension_numbers = #tpu.dot_dimension_numbers<[1], [0], [0], [1], [0, 0, 1, 1], [], []>} : vector<32x8xf32>, vector<8x256xf32>, vector<32x256xf32> -> vector<32x256xf32>
    %33 = vector.broadcast %7 : vector<32x1xf32> to vector<32x256xf32>
    %34 = arith.addf %32, %33 : vector<32x256xf32>
    %c0_28 = arith.constant 0 : index
    %c0_29 = arith.constant 0 : index
    %c0_30 = arith.constant 0 : index
    %35 = vector.load %arg12[%c0_28, %c0_29, %c0_30] : memref<2x32x256xf32, #tpu.memory_space<vmem>>, vector<1x32x256xf32>
    %36 = vector.shape_cast %35 : vector<1x32x256xf32> to vector<32x256xf32>
    %37 = vector.shape_cast %34 : vector<32x256xf32> to vector<1x32x256xf32>
    tpu.vector_store %arg12[%c0_28, %c0_29, %c0_30], %37 {strides = array<i32>} : memref<2x32x256xf32, #tpu.memory_space<vmem>>, vector<1x32x256xf32>,
    %c1 = arith.constant 1 : index
    %c0_31 = arith.constant 0 : index
    %c0_32 = arith.constant 0 : index
    %38 = vector.load %arg2[%c1, %c0_31, %c0_32] : memref<2x3x256xf32, #tpu.memory_space<vmem>>, vector<1x3x256xf32>
    %39 = vector.shape_cast %38 : vector<1x3x256xf32> to vector<3x256xf32>
    %cst_33 = arith.constant dense<0.000000e+00> : vector<4x256xf32>
    %40 = tpu.matmul %0, %39, %cst_33 {dimension_numbers = #tpu.dot_dimension_numbers<[1], [0], [0], [1], [0, 0, 1, 1], [], []>} : vector<4x3xf32>, vector<3x256xf32>, vector<4x256xf32> -> vector<4x256xf32>
    %41 = vector.broadcast %1 : vector<4x1xf32> to vector<4x256xf32>
    %42 = arith.addf %40, %41 : vector<4x256xf32>
    %cst_34 = arith.constant 0.000000e+00 : f32
    %43 = vector.broadcast %cst_34 : f32 to vector<4x256xf32>
    %44 = arith.cmpf ogt, %42, %43 : vector<4x256xf32>
    %cst_35 = arith.constant 2.000000e-01 : f32
    %45 = vector.broadcast %cst_35 : f32 to vector<4x256xf32>
    %46 = arith.mulf %45, %42 : vector<4x256xf32>
    %47 = arith.select %44, %42, %46 : vector<4x256xi1>, vector<4x256xf32>
    %cst_36 = arith.constant dense<0.000000e+00> : vector<8x256xf32>
    %48 = tpu.matmul %2, %47, %cst_36 {dimension_numbers = #tpu.dot_dimension_numbers<[1], [0], [0], [1], [0, 0, 1, 1], [], []>} : vector<8x4xf32>, vector<4x256xf32>, vector<8x256xf32> -> vector<8x256xf32>
    %49 = vector.broadcast %3 : vector<8x1xf32> to vector<8x256xf32>
    %50 = arith.addf %48, %49 : vector<8x256xf32>
    %cst_37 = arith.constant 0.000000e+00 : f32
    %51 = vector.broadcast %cst_37 : f32 to vector<8x256xf32>
    %52 = arith.cmpf ogt, %50, %51 : vector<8x256xf32>
    %cst_38 = arith.constant 2.000000e-01 : f32
    %53 = vector.broadcast %cst_38 : f32 to vector<8x256xf32>
    %54 = arith.mulf %53, %50 : vector<8x256xf32>
    %55 = arith.select %52, %50, %54 : vector<8x256xi1>, vector<8x256xf32>
    %cst_39 = arith.constant dense<0.000000e+00> : vector<32x256xf32>
    %56 = tpu.matmul %4, %55, %cst_39 {dimension_numbers = #tpu.dot_dimension_numbers<[1], [0], [0], [1], [0, 0, 1, 1], [], []>} : vector<32x8xf32>, vector<8x256xf32>, vector<32x256xf32> -> vector<32x256xf32>
    %57 = vector.broadcast %5 : vector<32x1xf32> to vector<32x256xf32>
    %58 = arith.addf %56, %57 : vector<32x256xf32>
    %c1_40 = arith.constant 1 : index
    %c0_41 = arith.constant 0 : index
    %c0_42 = arith.constant 0 : index
    %59 = vector.load %arg11[%c1_40, %c0_41, %c0_42] : memref<2x32x256xf32, #tpu.memory_space<vmem>>, vector<1x32x256xf32>
    %60 = vector.shape_cast %59 : vector<1x32x256xf32> to vector<32x256xf32>
    %61 = vector.shape_cast %58 : vector<32x256xf32> to vector<1x32x256xf32>
    tpu.vector_store %arg11[%c1_40, %c0_41, %c0_42], %61 {strides = array<i32>} : memref<2x32x256xf32, #tpu.memory_space<vmem>>, vector<1x32x256xf32>,
    %cst_43 = arith.constant dense<0.000000e+00> : vector<32x256xf32>
    %62 = tpu.matmul %6, %55, %cst_43 {dimension_numbers = #tpu.dot_dimension_numbers<[1], [0], [0], [1], [0, 0, 1, 1], [], []>} : vector<32x8xf32>, vector<8x256xf32>, vector<32x256xf32> -> vector<32x256xf32>
    %63 = vector.broadcast %7 : vector<32x1xf32> to vector<32x256xf32>
    %64 = arith.addf %62, %63 : vector<32x256xf32>
    %c1_44 = arith.constant 1 : index
    %c0_45 = arith.constant 0 : index
    %c0_46 = arith.constant 0 : index
    %65 = vector.load %arg12[%c1_44, %c0_45, %c0_46] : memref<2x32x256xf32, #tpu.memory_space<vmem>>, vector<1x32x256xf32>
    %66 = vector.shape_cast %65 : vector<1x32x256xf32> to vector<32x256xf32>
    %67 = vector.shape_cast %64 : vector<32x256xf32> to vector<1x32x256xf32>
    tpu.vector_store %arg12[%c1_44, %c0_45, %c0_46], %67 {strides = array<i32>} : memref<2x32x256xf32, #tpu.memory_space<vmem>>, vector<1x32x256xf32>,
    return
  }
  func.func @transform_0(%arg0: i32, %arg1: i32) -> (i32, i32, i32) {
    %c0_i32 = arith.constant 0 : i32
    %c0_i32_0 = arith.constant 0 : i32
    return %arg0, %c0_i32, %arg1 : i32, i32, i32
  }
  func.func @transform_1(%arg0: i32, %arg1: i32) -> (i32, i32) {
    %c0_i32 = arith.constant 0 : i32
    %c0_i32_0 = arith.constant 0 : i32
    %c0_i32_1 = arith.constant 0 : i32
    return %c0_i32, %c0_i32_0 : i32, i32
  }
  func.func @transform_2(%arg0: i32, %arg1: i32) -> (i32, i32) {
    %c0_i32 = arith.constant 0 : i32
    %c0_i32_0 = arith.constant 0 : i32
    %c0_i32_1 = arith.constant 0 : i32
    return %c0_i32, %c0_i32_0 : i32, i32
  }
  func.func @transform_3(%arg0: i32, %arg1: i32) -> (i32, i32) {
    %c0_i32 = arith.constant 0 : i32
    %c0_i32_0 = arith.constant 0 : i32
    %c0_i32_1 = arith.constant 0 : i32
    return %c0_i32, %c0_i32_0 : i32, i32
  }
  func.func @transform_4(%arg0: i32, %arg1: i32) -> (i32, i32) {
    %c0_i32 = arith.constant 0 : i32
    %c0_i32_0 = arith.constant 0 : i32
    %c0_i32_1 = arith.constant 0 : i32
    return %c0_i32, %c0_i32_0 : i32, i32
  }
  func.func @transform_5(%arg0: i32, %arg1: i32) -> (i32, i32) {
    %c0_i32 = arith.constant 0 : i32
    %c0_i32_0 = arith.constant 0 : i32
    %c0_i32_1 = arith.constant 0 : i32
    return %c0_i32, %c0_i32_0 : i32, i32
  }
  func.func @transform_6(%arg0: i32, %arg1: i32) -> (i32, i32) {
    %c0_i32 = arith.constant 0 : i32
    %c0_i32_0 = arith.constant 0 : i32
    %c0_i32_1 = arith.constant 0 : i32
    return %c0_i32, %c0_i32_0 : i32, i32
  }
  func.func @transform_7(%arg0: i32, %arg1: i32) -> (i32, i32) {
    %c0_i32 = arith.constant 0 : i32
    %c0_i32_0 = arith.constant 0 : i32
    %c0_i32_1 = arith.constant 0 : i32
    return %c0_i32, %c0_i32_0 : i32, i32
  }
  func.func @transform_8(%arg0: i32, %arg1: i32) -> (i32, i32) {
    %c0_i32 = arith.constant 0 : i32
    %c0_i32_0 = arith.constant 0 : i32
    %c0_i32_1 = arith.constant 0 : i32
    return %c0_i32, %c0_i32_0 : i32, i32
  }
  func.func @transform_9(%arg0: i32, %arg1: i32) -> (i32, i32, i32) {
    %c0_i32 = arith.constant 0 : i32
    %c0_i32_0 = arith.constant 0 : i32
    return %arg0, %c0_i32, %arg1 : i32, i32, i32
  }
  func.func @transform_10(%arg0: i32, %arg1: i32) -> (i32, i32, i32) {
    %c0_i32 = arith.constant 0 : i32
    %c0_i32_0 = arith.constant 0 : i32
    return %arg0, %c0_i32, %arg1 : i32, i32, i32
  }
}

</mosaic_0001>

<llo_original>
// kernel: tpu_custom_call.1
$region0: #{tpu_custom_call.1}
  #allocation0 [shape = 'u32[]', space=smem, size = 0x4, offset = 0x4, fixed_abs, tag = 'smem constant byte address 0x4 - core index']
  #allocation1 [shape = 'u32[144,128]{1,0:T(1,128)}', space=vmem, size = 0x12000, scoped, tag = 'internal scratch']
  %s0 = inlined_call_operand.vmem [shape: f32[2,3,256], index: 0, kind: input, shape index: {}]
  %s1 = inlined_call_operand.vmem [shape: f32[4,3], index: 1, kind: input, shape index: {}]
  %s2 = inlined_call_operand.vmem [shape: f32[4,1], index: 2, kind: input, shape index: {}]
  %s3 = inlined_call_operand.vmem [shape: f32[8,4], index: 3, kind: input, shape index: {}]
  %s4 = inlined_call_operand.vmem [shape: f32[8,1], index: 4, kind: input, shape index: {}]
  %s5 = inlined_call_operand.vmem [shape: f32[32,8], index: 5, kind: input, shape index: {}]
  %s6 = inlined_call_operand.vmem [shape: f32[32,1], index: 6, kind: input, shape index: {}]
  %s7 = inlined_call_operand.vmem [shape: f32[32,8], index: 7, kind: input, shape index: {}]
  %s8 = inlined_call_operand.vmem [shape: f32[32,1], index: 8, kind: input, shape index: {}]
  %s9 = inlined_call_operand.hbm [shape: f32[2,32,256], index: 9, kind: output, shape index: {0}]
  %s10 = inlined_call_operand.hbm [shape: f32[2,32,256], index: 10, kind: output, shape index: {1}]
  %11 = xla_tuple %s9, %s10
  %s12 = sld [smem:[#allocation0]]
  $region54: #{tpu_custom_call.1} parent=0
    _
  %s14 = ssub.s32 1, %s12
  %s15 = scalar_select 0, %s14, %s12
  $region1: #{tpu_custom_call.1} parent=0
    #allocation2 [shape = 'u8[65536]{0}', space=vmem, size = 0x10000, scoped, tag = 'output window, operand 0, single buffered']
    #allocation3 [shape = 's32[1]{0}', space=sflag, size = 0x4, scoped, tag = 'scoped memory for tpu_custom_call.1']
    #allocation4 [shape = 'u8[65536]{0}', space=vmem, size = 0x10000, scoped, tag = 'output window, operand 1, single buffered']
    #allocation5 [shape = 's32[1]{0}', space=sflag, size = 0x4, scoped, tag = 'scoped memory for tpu_custom_call.1']
    %16 = vsyncpa [#allocation3], 0
    %17 = vsyncpa [#allocation5], 0
    // Predicated region
    $region2: #{tpu_custom_call.1} parent=1 // pred_check
      _
    $region3: #{tpu_custom_call.1} parent=1 // pred_check_branch
      %19 = sbr.rel (0) target = $region5
    $region4: #{tpu_custom_call.1} parent=1 // pred_region
      _
    $region5: #{tpu_custom_call.1} parent=1 // pred_fallthru
      _
    // Predicated region
    $region6: #{tpu_custom_call.1} parent=1 // pred_check
      _
    $region7: #{tpu_custom_call.1} parent=1 // pred_check_branch
      %21 = sbr.rel (0) target = $region9
    $region8: #{tpu_custom_call.1} parent=1 // pred_region
      _
    $region9: #{tpu_custom_call.1} parent=1 // pred_fallthru
      _
    // Predicated region
    $region10: #{tpu_custom_call.1} parent=1 // pred_check
      _
    $region11: #{tpu_custom_call.1} parent=1 // pred_check_branch
      %23 = sbr.rel (0) target = $region13
    $region12: #{tpu_custom_call.1} parent=1 // pred_region
      _
    $region13: #{tpu_custom_call.1} parent=1 // pred_fallthru
      _
    // Predicated region
    $region14: #{tpu_custom_call.1} parent=1 // pred_check
      _
    $region15: #{tpu_custom_call.1} parent=1 // pred_check_branch
      %25 = sbr.rel (0) target = $region17
    $region16: #{tpu_custom_call.1} parent=1 // pred_region
      _
    $region17: #{tpu_custom_call.1} parent=1 // pred_fallthru
      _
    // Predicated region
    $region18: #{tpu_custom_call.1} parent=1 // pred_check
      _
    $region19: #{tpu_custom_call.1} parent=1 // pred_check_branch
      %27 = sbr.rel (0) target = $region21
    $region20: #{tpu_custom_call.1} parent=1 // pred_region
      _
    $region21: #{tpu_custom_call.1} parent=1 // pred_fallthru
      _
    // Predicated region
    $region22: #{tpu_custom_call.1} parent=1 // pred_check
      _
    $region23: #{tpu_custom_call.1} parent=1 // pred_check_branch
      %29 = sbr.rel (0) target = $region25
    $region24: #{tpu_custom_call.1} parent=1 // pred_region
      _
    $region25: #{tpu_custom_call.1} parent=1 // pred_fallthru
      _
    // Predicated region
    $region26: #{tpu_custom_call.1} parent=1 // pred_check
      _
    $region27: #{tpu_custom_call.1} parent=1 // pred_check_branch
      %31 = sbr.rel (0) target = $region29
    $region28: #{tpu_custom_call.1} parent=1 // pred_region
      _
    $region29: #{tpu_custom_call.1} parent=1 // pred_fallthru
      _
    // Predicated region
    $region30: #{tpu_custom_call.1} parent=1 // pred_check
      _
    $region31: #{tpu_custom_call.1} parent=1 // pred_check_branch
      %33 = sbr.rel (0) target = $region33
    $region32: #{tpu_custom_call.1} parent=1 // pred_region
      _
    $region33: #{tpu_custom_call.1} parent=1 // pred_fallthru
      _
    // Predicated region
    $region34: #{tpu_custom_call.1} parent=1 // pred_check
      _
    $region35: #{tpu_custom_call.1} parent=1 // pred_check_branch
      %35 = sbr.rel (0) target = $region37
    $region36: #{tpu_custom_call.1} parent=1 // pred_region
      _
    $region37: #{tpu_custom_call.1} parent=1 // pred_fallthru
      _
    %v36 = vld [vmem:[%s1] sm:$0xf]
    %v37 = vld [vmem:[%s2] sm:$0xf]
    %v38 = vld [vmem:[%s3] sm:$0xff]
    %v39 = vld [vmem:[%s4] sm:$0xff]
    %v40 = vld [vmem:[%s5] sm:$0xff]
    %v41 = vld [vmem:[%s5 + $0x8] sm:$0xff]
    %v42 = vld [vmem:[%s5 + $0x10] sm:$0xff]
    %v43 = vld [vmem:[%s5 + $0x18] sm:$0xff]
    %v44 = vld [vmem:[%s6] sm:$0xff]
    %v45 = vld [vmem:[%s6 + $0x8] sm:$0xff]
    %v46 = vld [vmem:[%s6 + $0x10] sm:$0xff]
    %v47 = vld [vmem:[%s6 + $0x18] sm:$0xff]
    %v48 = vld [vmem:[%s7] sm:$0xff]
    %v49 = vld [vmem:[%s7 + $0x8] sm:$0xff]
    %v50 = vld [vmem:[%s7 + $0x10] sm:$0xff]
    %v51 = vld [vmem:[%s7 + $0x18] sm:$0xff]
    %v52 = vld [vmem:[%s8] sm:$0xff]
    %v53 = vld [vmem:[%s8 + $0x8] sm:$0xff]
    %v54 = vld [vmem:[%s8 + $0x10] sm:$0xff]
    %v55 = vld [vmem:[%s8 + $0x18] sm:$0xff]
    %v56 = vld [vmem:[%s0] sm:$0x77]
    %58 = vset.pattern.permute.xlu0 0
    %59 = vperm.xlu0 %58, %v37
    %v60 = vpop.permute.xlu0 %59
    %v63 = vcombine.high %v56, %v56
    %vm64 = vcmask 23552
    %v66 = vsel %vm64, %v36, 0
    %vm68 = vcmask 1042432
    %v69 = vsel %vm68, %v56, 0
    %v71 = vsel %vm68, %v63, 0
    %73 = vmatprep.subr.mxu0 0.0
    %74 = vmatpush1.msra.mxu0 0.0
    %75 = vmatprep.subr.mxu0 0.0
    %76 = vmatpush1.msra.mxu0 0.0
    %77 = vmatprep.subr.mxu0 0.0
    %78 = vmatpush1.msra.mxu0 0.0
    %79 = vmatprep.subr.mxu0 0.0
    %80 = vmatpush1.msra.mxu0 0.0
    %81 = vmatprep.subr.mxu0 0.0
    %82 = vmatpush1.msra.mxu0 0.0
    %83 = vmatprep.subr.mxu0 0.0
    %84 = vmatpush1.msra.mxu0 0.0
    %85 = vmatprep.subr.mxu0 0.0
    %86 = vmatpush1.msra.mxu0 0.0
    %87 = vmatprep.subr.mxu0 0.0
    %88 = vmatpush1.msra.mxu0 0.0
    %89 = vmatprep.subr.mxu0 0.0
    %90 = vmatpush1.msra.mxu0 0.0
    %91 = vmatprep.subr.mxu0 0.0
    %92 = vmatpush1.msra.mxu0 0.0
    %93 = vmatprep.subr.mxu0 0.0
    %94 = vmatpush1.msra.mxu0 0.0
    %95 = vmatprep.subr.mxu0 0.0
    %96 = vmatpush1.msra.mxu0 0.0
    %97 = vmatprep.subr.mxu0 0.0
    %98 = vmatpush1.msra.mxu0 0.0
    %99 = vmatprep.subr.mxu0 0.0
    %100 = vmatpush1.msra.mxu0 0.0
    %101 = vmatprep.subr.mxu0 0.0
    %102 = vmatpush1.msra.mxu0 0.0
    %103 = vmatprep.subr.mxu0 %v71
    %104 = vmatpush1.msra.mxu0 %v69
    %105 = vmatprep.subr.mxu0 0.0
    %106 = vmatpush2.msra.mxu0 0.0
    %107 = vmatprep.subr.mxu0 0.0
    %108 = vmatpush2.msra.mxu0 0.0
    %109 = vmatprep.subr.mxu0 0.0
    %110 = vmatpush2.msra.mxu0 0.0
    %111 = vmatprep.subr.mxu0 0.0
    %112 = vmatpush2.msra.mxu0 0.0
    %113 = vmatprep.subr.mxu0 0.0
    %114 = vmatpush2.msra.mxu0 0.0
    %115 = vmatprep.subr.mxu0 0.0
    %116 = vmatpush2.msra.mxu0 0.0
    %117 = vmatprep.subr.mxu0 0.0
    %118 = vmatpush2.msra.mxu0 0.0
    %119 = vmatprep.subr.mxu0 0.0
    %120 = vmatpush2.msra.mxu0 0.0
    %121 = vmatprep.subr.mxu0 0.0
    %122 = vmatpush2.msra.mxu0 0.0
    %123 = vmatprep.subr.mxu0 0.0
    %124 = vmatpush2.msra.mxu0 0.0
    %125 = vmatprep.subr.mxu0 0.0
    %126 = vmatpush2.msra.mxu0 0.0
    %127 = vmatprep.subr.mxu0 0.0
    %128 = vmatpush2.msra.mxu0 0.0
    %129 = vmatprep.subr.mxu0 0.0
    %130 = vmatpush2.msra.mxu0 0.0
    %131 = vmatprep.subr.mxu0 0.0
    %132 = vmatpush2.msra.mxu0 0.0
    %133 = vmatprep.subr.mxu0 0.0
    %134 = vmatpush2.msra.mxu0 0.0
    %135 = vmatprep.subr.mxu0 0.0
    %136 = vmatpush2.msra.mxu0 0.0
    %137 = vmatprep.mubr.f32.mxu0 0.0
    %138 = vmatmul.mubr.f32.gmra.mxu0 %v66
    %v139 = vpop.f32.mrf.mxu0
    %v140 = vadd.f32 %v60, %v139
    %v141 = vpop.f32.mrf.mxu0
    %v142 = vadd.f32 %v60, %v141
    %143 = vdwg.mxu0
    %vm144 = vcmp.gt.f32.partialorder %v140, 0.0
    %vm145 = vcmp.gt.f32.partialorder %v142, 0.0
    %v146 = vmul.f32 %v140, 0.2
    %v147 = vmul.f32 %v142, 0.2
    %v148 = vsel %vm144, %v140, %v146
    %v149 = vsel %vm145, %v142, %v147
    %151 = vset.pattern.permute.xlu0 0
    %152 = vperm.xlu0 %151, %v39
    %v153 = vpop.permute.xlu0 %152
    %vm155 = vcmask 31744
    %v157 = vsel %vm155, %v38, 0
    %vm159 = vcmask 1043456
    %v161 = vsel %vm159, %v148, 0
    %v164 = vsel %vm159, %v149, 0
    %166 = vmatprep.subr.mxu0 0.0
    %167 = vmatpush1.msra.mxu0 0.0
    %168 = vmatprep.subr.mxu0 0.0
    %169 = vmatpush1.msra.mxu0 0.0
    %170 = vmatprep.subr.mxu0 0.0
    %171 = vmatpush1.msra.mxu0 0.0
    %172 = vmatprep.subr.mxu0 0.0
    %173 = vmatpush1.msra.mxu0 0.0
    %174 = vmatprep.subr.mxu0 0.0
    %175 = vmatpush1.msra.mxu0 0.0
    %176 = vmatprep.subr.mxu0 0.0
    %177 = vmatpush1.msra.mxu0 0.0
    %178 = vmatprep.subr.mxu0 0.0
    %179 = vmatpush1.msra.mxu0 0.0
    %180 = vmatprep.subr.mxu0 0.0
    %181 = vmatpush1.msra.mxu0 0.0
    %182 = vmatprep.subr.mxu0 0.0
    %183 = vmatpush1.msra.mxu0 0.0
    %184 = vmatprep.subr.mxu0 0.0
    %185 = vmatpush1.msra.mxu0 0.0
    %186 = vmatprep.subr.mxu0 0.0
    %187 = vmatpush1.msra.mxu0 0.0
    %188 = vmatprep.subr.mxu0 0.0
    %189 = vmatpush1.msra.mxu0 0.0
    %190 = vmatprep.subr.mxu0 0.0
    %191 = vmatpush1.msra.mxu0 0.0
    %192 = vmatprep.subr.mxu0 0.0
    %193 = vmatpush1.msra.mxu0 0.0
    %194 = vmatprep.subr.mxu0 0.0
    %195 = vmatpush1.msra.mxu0 0.0
    %196 = vmatprep.subr.mxu0 %v164
    %197 = vmatpush1.msra.mxu0 %v161
    %198 = vmatprep.subr.mxu0 0.0
    %199 = vmatpush2.msra.mxu0 0.0
    %200 = vmatprep.subr.mxu0 0.0
    %201 = vmatpush2.msra.mxu0 0.0
    %202 = vmatprep.subr.mxu0 0.0
    %203 = vmatpush2.msra.mxu0 0.0
    %204 = vmatprep.subr.mxu0 0.0
    %205 = vmatpush2.msra.mxu0 0.0
    %206 = vmatprep.subr.mxu0 0.0
    %207 = vmatpush2.msra.mxu0 0.0
    %208 = vmatprep.subr.mxu0 0.0
    %209 = vmatpush2.msra.mxu0 0.0
    %210 = vmatprep.subr.mxu0 0.0
    %211 = vmatpush2.msra.mxu0 0.0
    %212 = vmatprep.subr.mxu0 0.0
    %213 = vmatpush2.msra.mxu0 0.0
    %214 = vmatprep.subr.mxu0 0.0
    %215 = vmatpush2.msra.mxu0 0.0
    %216 = vmatprep.subr.mxu0 0.0
    %217 = vmatpush2.msra.mxu0 0.0
    %218 = vmatprep.subr.mxu0 0.0
    %219 = vmatpush2.msra.mxu0 0.0
    %220 = vmatprep.subr.mxu0 0.0
    %221 = vmatpush2.msra.mxu0 0.0
    %222 = vmatprep.subr.mxu0 0.0
    %223 = vmatpush2.msra.mxu0 0.0
    %224 = vmatprep.subr.mxu0 0.0
    %225 = vmatpush2.msra.mxu0 0.0
    %226 = vmatprep.subr.mxu0 0.0
    %227 = vmatpush2.msra.mxu0 0.0
    %228 = vmatprep.subr.mxu0 0.0
    %229 = vmatpush2.msra.mxu0 0.0
    %230 = vmatprep.mubr.f32.mxu0 0.0
    %231 = vmatmul.mubr.f32.gmra.mxu0 %v157
    %v232 = vpop.f32.mrf.mxu0
    %v233 = vadd.f32 %v153, %v232
    %v234 = vpop.f32.mrf.mxu0
    %v235 = vadd.f32 %v153, %v234
    %236 = vdwg.mxu0
    %vm237 = vcmp.gt.f32.partialorder %v233, 0.0
    %vm238 = vcmp.gt.f32.partialorder %v235, 0.0
    %v239 = vmul.f32 %v233, 0.2
    %v240 = vmul.f32 %v235, 0.2
    %v241 = vsel %vm237, %v233, %v239
    %v242 = vsel %vm238, %v235, %v240
    %244 = vset.pattern.permute.xlu0 0
    %245 = vperm.xlu0 %244, %v44
    %v246 = vpop.permute.xlu0 %245
    %249 = vset.pattern.permute.xlu0 0
    %250 = vperm.xlu0 %249, %v45
    %v251 = vpop.permute.xlu0 %250
    %254 = vset.pattern.permute.xlu0 0
    %255 = vperm.xlu0 %254, %v46
    %v256 = vpop.permute.xlu0 %255
    %259 = vset.pattern.permute.xlu0 0
    %260 = vperm.xlu0 %259, %v47
    %v261 = vpop.permute.xlu0 %260
    %vm263 = vcmask 64512
    %v265 = vsel %vm263, %v40, 0
    %v268 = vsel %vm263, %v41, 0
    %v271 = vsel %vm263, %v42, 0
    %v274 = vsel %vm263, %v43, 0
    %276 = vmatprep.subr.mxu0 0.0
    %277 = vmatpush1.msra.mxu0 0.0
    %278 = vmatprep.subr.mxu0 0.0
    %279 = vmatpush1.msra.mxu0 0.0
    %280 = vmatprep.subr.mxu0 0.0
    %281 = vmatpush1.msra.mxu0 0.0
    %282 = vmatprep.subr.mxu0 0.0
    %283 = vmatpush1.msra.mxu0 0.0
    %284 = vmatprep.subr.mxu0 0.0
    %285 = vmatpush1.msra.mxu0 0.0
    %286 = vmatprep.subr.mxu0 0.0
    %287 = vmatpush1.msra.mxu0 0.0
    %288 = vmatprep.subr.mxu0 0.0
    %289 = vmatpush1.msra.mxu0 0.0
    %290 = vmatprep.subr.mxu0 0.0
    %291 = vmatpush1.msra.mxu0 0.0
    %292 = vmatprep.subr.mxu0 0.0
    %293 = vmatpush1.msra.mxu0 0.0
    %294 = vmatprep.subr.mxu0 0.0
    %295 = vmatpush1.msra.mxu0 0.0
    %296 = vmatprep.subr.mxu0 0.0
    %297 = vmatpush1.msra.mxu0 0.0
    %298 = vmatprep.subr.mxu0 0.0
    %299 = vmatpush1.msra.mxu0 0.0
    %300 = vmatprep.subr.mxu0 0.0
    %301 = vmatpush1.msra.mxu0 0.0
    %302 = vmatprep.subr.mxu0 0.0
    %303 = vmatpush1.msra.mxu0 0.0
    %304 = vmatprep.subr.mxu0 0.0
    %305 = vmatpush1.msra.mxu0 0.0
    %306 = vmatprep.subr.mxu0 %v242
    %307 = vmatpush1.msra.mxu0 %v241
    %308 = vmatprep.subr.mxu0 0.0
    %309 = vmatpush2.msra.mxu0 0.0
    %310 = vmatprep.subr.mxu0 0.0
    %311 = vmatpush2.msra.mxu0 0.0
    %312 = vmatprep.subr.mxu0 0.0
    %313 = vmatpush2.msra.mxu0 0.0
    %314 = vmatprep.subr.mxu0 0.0
    %315 = vmatpush2.msra.mxu0 0.0
    %316 = vmatprep.subr.mxu0 0.0
    %317 = vmatpush2.msra.mxu0 0.0
    %318 = vmatprep.subr.mxu0 0.0
    %319 = vmatpush2.msra.mxu0 0.0
    %320 = vmatprep.subr.mxu0 0.0
    %321 = vmatpush2.msra.mxu0 0.0
    %322 = vmatprep.subr.mxu0 0.0
    %323 = vmatpush2.msra.mxu0 0.0
    %324 = vmatprep.subr.mxu0 0.0
    %325 = vmatpush2.msra.mxu0 0.0
    %326 = vmatprep.subr.mxu0 0.0
    %327 = vmatpush2.msra.mxu0 0.0
    %328 = vmatprep.subr.mxu0 0.0
    %329 = vmatpush2.msra.mxu0 0.0
    %330 = vmatprep.subr.mxu0 0.0
    %331 = vmatpush2.msra.mxu0 0.0
    %332 = vmatprep.subr.mxu0 0.0
    %333 = vmatpush2.msra.mxu0 0.0
    %334 = vmatprep.subr.mxu0 0.0
    %335 = vmatpush2.msra.mxu0 0.0
    %336 = vmatprep.subr.mxu0 0.0
    %337 = vmatpush2.msra.mxu0 0.0
    %338 = vmatprep.subr.mxu0 0.0
    %339 = vmatpush2.msra.mxu0 0.0
    %340 = vmatprep.mubr.f32.mxu0 0.0
    %341 = vmatmul.mubr.f32.gmra.mxu0 %v265
    %v342 = vpop.f32.mrf.mxu0
    %v343 = vadd.f32 %v246, %v342
    %v344 = vpop.f32.mrf.mxu0
    %v345 = vadd.f32 %v246, %v344
    %346 = vmatprep.mubr.f32.mxu0 0.0
    %347 = vmatmul.mubr.f32.gmra.mxu0 %v268
    %v348 = vpop.f32.mrf.mxu0
    %v349 = vadd.f32 %v251, %v348
    %v350 = vpop.f32.mrf.mxu0
    %v351 = vadd.f32 %v251, %v350
    %352 = vmatprep.mubr.f32.mxu0 0.0
    %353 = vmatmul.mubr.f32.gmra.mxu0 %v271
    %v354 = vpop.f32.mrf.mxu0
    %v355 = vadd.f32 %v256, %v354
    %v356 = vpop.f32.mrf.mxu0
    %v357 = vadd.f32 %v256, %v356
    %358 = vmatprep.mubr.f32.mxu0 0.0
    %359 = vmatmul.mubr.f32.gmra.mxu0 %v274
    %v360 = vpop.f32.mrf.mxu0
    %v361 = vadd.f32 %v261, %v360
    %v362 = vpop.f32.mrf.mxu0
    %v363 = vadd.f32 %v261, %v362
    %364 = vdwg.mxu0
    %365 = vst [vmem:[#allocation2] sm:$0xff] %v343
    %366 = vst [vmem:[#allocation2 + $0x8] sm:$0xff] %v345
    %367 = vst [vmem:[#allocation2 + $0x10] sm:$0xff] %v349
    %368 = vst [vmem:[#allocation2 + $0x18] sm:$0xff] %v351
    %369 = vst [vmem:[#allocation2 + $0x20] sm:$0xff] %v355
    %370 = vst [vmem:[#allocation2 + $0x28] sm:$0xff] %v357
    %371 = vst [vmem:[#allocation2 + $0x30] sm:$0xff] %v361
    %372 = vst [vmem:[#allocation2 + $0x38] sm:$0xff] %v363
    %374 = vset.pattern.permute.xlu0 0
    %375 = vperm.xlu0 %374, %v52
    %v376 = vpop.permute.xlu0 %375
    %379 = vset.pattern.permute.xlu0 0
    %380 = vperm.xlu0 %379, %v53
    %v381 = vpop.permute.xlu0 %380
    %384 = vset.pattern.permute.xlu0 0
    %385 = vperm.xlu0 %384, %v54
    %v386 = vpop.permute.xlu0 %385
    %389 = vset.pattern.permute.xlu0 0
    %390 = vperm.xlu0 %389, %v55
    %v391 = vpop.permute.xlu0 %390
    %v394 = vsel %vm263, %v48, 0
    %v397 = vsel %vm263, %v49, 0
    %v400 = vsel %vm263, %v50, 0
    %v403 = vsel %vm263, %v51, 0
    %405 = vmatprep.subr.mxu0 0.0
    %406 = vmatpush1.msra.mxu0 0.0
    %407 = vmatprep.subr.mxu0 0.0
    %408 = vmatpush1.msra.mxu0 0.0
    %409 = vmatprep.subr.mxu0 0.0
    %410 = vmatpush1.msra.mxu0 0.0
    %411 = vmatprep.subr.mxu0 0.0
    %412 = vmatpush1.msra.mxu0 0.0
    %413 = vmatprep.subr.mxu0 0.0
    %414 = vmatpush1.msra.mxu0 0.0
    %415 = vmatprep.subr.mxu0 0.0
    %416 = vmatpush1.msra.mxu0 0.0
    %417 = vmatprep.subr.mxu0 0.0
    %418 = vmatpush1.msra.mxu0 0.0
    %419 = vmatprep.subr.mxu0 0.0
    %420 = vmatpush1.msra.mxu0 0.0
    %421 = vmatprep.subr.mxu0 0.0
    %422 = vmatpush1.msra.mxu0 0.0
    %423 = vmatprep.subr.mxu0 0.0
    %424 = vmatpush1.msra.mxu0 0.0
    %425 = vmatprep.subr.mxu0 0.0
    %426 = vmatpush1.msra.mxu0 0.0
    %427 = vmatprep.subr.mxu0 0.0
    %428 = vmatpush1.msra.mxu0 0.0
    %429 = vmatprep.subr.mxu0 0.0
    %430 = vmatpush1.msra.mxu0 0.0
    %431 = vmatprep.subr.mxu0 0.0
    %432 = vmatpush1.msra.mxu0 0.0
    %433 = vmatprep.subr.mxu0 0.0
    %434 = vmatpush1.msra.mxu0 0.0
    %435 = vmatprep.subr.mxu0 %v242
    %436 = vmatpush1.msra.mxu0 %v241
    %437 = vmatprep.subr.mxu0 0.0
    %438 = vmatpush2.msra.mxu0 0.0
    %439 = vmatprep.subr.mxu0 0.0
    %440 = vmatpush2.msra.mxu0 0.0
    %441 = vmatprep.subr.mxu0 0.0
    %442 = vmatpush2.msra.mxu0 0.0
    %443 = vmatprep.subr.mxu0 0.0
    %444 = vmatpush2.msra.mxu0 0.0
    %445 = vmatprep.subr.mxu0 0.0
    %446 = vmatpush2.msra.mxu0 0.0
    %447 = vmatprep.subr.mxu0 0.0
    %448 = vmatpush2.msra.mxu0 0.0
    %449 = vmatprep.subr.mxu0 0.0
    %450 = vmatpush2.msra.mxu0 0.0
    %451 = vmatprep.subr.mxu0 0.0
    %452 = vmatpush2.msra.mxu0 0.0
    %453 = vmatprep.subr.mxu0 0.0
    %454 = vmatpush2.msra.mxu0 0.0
    %455 = vmatprep.subr.mxu0 0.0
    %456 = vmatpush2.msra.mxu0 0.0
    %457 = vmatprep.subr.mxu0 0.0
    %458 = vmatpush2.msra.mxu0 0.0
    %459 = vmatprep.subr.mxu0 0.0
    %460 = vmatpush2.msra.mxu0 0.0
    %461 = vmatprep.subr.mxu0 0.0
    %462 = vmatpush2.msra.mxu0 0.0
    %463 = vmatprep.subr.mxu0 0.0
    %464 = vmatpush2.msra.mxu0 0.0
    %465 = vmatprep.subr.mxu0 0.0
    %466 = vmatpush2.msra.mxu0 0.0
    %467 = vmatprep.subr.mxu0 0.0
    %468 = vmatpush2.msra.mxu0 0.0
    %469 = vmatprep.mubr.f32.mxu0 0.0
    %470 = vmatmul.mubr.f32.gmra.mxu0 %v394
    %v471 = vpop.f32.mrf.mxu0
    %v472 = vadd.f32 %v376, %v471
    %v473 = vpop.f32.mrf.mxu0
    %v474 = vadd.f32 %v376, %v473
    %475 = vmatprep.mubr.f32.mxu0 0.0
    %476 = vmatmul.mubr.f32.gmra.mxu0 %v397
    %v477 = vpop.f32.mrf.mxu0
    %v478 = vadd.f32 %v381, %v477
    %v479 = vpop.f32.mrf.mxu0
    %v480 = vadd.f32 %v381, %v479
    %481 = vmatprep.mubr.f32.mxu0 0.0
    %482 = vmatmul.mubr.f32.gmra.mxu0 %v400
    %v483 = vpop.f32.mrf.mxu0
    %v484 = vadd.f32 %v386, %v483
    %v485 = vpop.f32.mrf.mxu0
    %v486 = vadd.f32 %v386, %v485
    %487 = vmatprep.mubr.f32.mxu0 0.0
    %488 = vmatmul.mubr.f32.gmra.mxu0 %v403
    %v489 = vpop.f32.mrf.mxu0
    %v490 = vadd.f32 %v391, %v489
    %v491 = vpop.f32.mrf.mxu0
    %v492 = vadd.f32 %v391, %v491
    %493 = vdwg.mxu0
    %494 = vst [vmem:[#allocation4] sm:$0xff] %v472
    %495 = vst [vmem:[#allocation4 + $0x8] sm:$0xff] %v474
    %496 = vst [vmem:[#allocation4 + $0x10] sm:$0xff] %v478
    %497 = vst [vmem:[#allocation4 + $0x18] sm:$0xff] %v480
    %498 = vst [vmem:[#allocation4 + $0x20] sm:$0xff] %v484
    %499 = vst [vmem:[#allocation4 + $0x28] sm:$0xff] %v486
    %500 = vst [vmem:[#allocation4 + $0x30] sm:$0xff] %v490
    %501 = vst [vmem:[#allocation4 + $0x38] sm:$0xff] %v492
    %s502 = scalar_lea.vmem %s0, 8
    %v503 = vld [vmem:[%s502] sm:$0x77]
    %v505 = vcombine.high %v503, %v503
    %v506 = vsel %vm68, %v503, 0
    %v508 = vsel %vm68, %v505, 0
    %510 = vmatprep.subr.mxu0 0.0
    %511 = vmatpush1.msra.mxu0 0.0
    %512 = vmatprep.subr.mxu0 0.0
    %513 = vmatpush1.msra.mxu0 0.0
    %514 = vmatprep.subr.mxu0 0.0
    %515 = vmatpush1.msra.mxu0 0.0
    %516 = vmatprep.subr.mxu0 0.0
    %517 = vmatpush1.msra.mxu0 0.0
    %518 = vmatprep.subr.mxu0 0.0
    %519 = vmatpush1.msra.mxu0 0.0
    %520 = vmatprep.subr.mxu0 0.0
    %521 = vmatpush1.msra.mxu0 0.0
    %522 = vmatprep.subr.mxu0 0.0
    %523 = vmatpush1.msra.mxu0 0.0
    %524 = vmatprep.subr.mxu0 0.0
    %525 = vmatpush1.msra.mxu0 0.0
    %526 = vmatprep.subr.mxu0 0.0
    %527 = vmatpush1.msra.mxu0 0.0
    %528 = vmatprep.subr.mxu0 0.0
    %529 = vmatpush1.msra.mxu0 0.0
    %530 = vmatprep.subr.mxu0 0.0
    %531 = vmatpush1.msra.mxu0 0.0
    %532 = vmatprep.subr.mxu0 0.0
    %533 = vmatpush1.msra.mxu0 0.0
    %534 = vmatprep.subr.mxu0 0.0
    %535 = vmatpush1.msra.mxu0 0.0
    %536 = vmatprep.subr.mxu0 0.0
    %537 = vmatpush1.msra.mxu0 0.0
    %538 = vmatprep.subr.mxu0 0.0
    %539 = vmatpush1.msra.mxu0 0.0
    %540 = vmatprep.subr.mxu0 %v508
    %541 = vmatpush1.msra.mxu0 %v506
    %542 = vmatprep.subr.mxu0 0.0
    %543 = vmatpush2.msra.mxu0 0.0
    %544 = vmatprep.subr.mxu0 0.0
    %545 = vmatpush2.msra.mxu0 0.0
    %546 = vmatprep.subr.mxu0 0.0
    %547 = vmatpush2.msra.mxu0 0.0
    %548 = vmatprep.subr.mxu0 0.0
    %549 = vmatpush2.msra.mxu0 0.0
    %550 = vmatprep.subr.mxu0 0.0
    %551 = vmatpush2.msra.mxu0 0.0
    %552 = vmatprep.subr.mxu0 0.0
    %553 = vmatpush2.msra.mxu0 0.0
    %554 = vmatprep.subr.mxu0 0.0
    %555 = vmatpush2.msra.mxu0 0.0
    %556 = vmatprep.subr.mxu0 0.0
    %557 = vmatpush2.msra.mxu0 0.0
    %558 = vmatprep.subr.mxu0 0.0
    %559 = vmatpush2.msra.mxu0 0.0
    %560 = vmatprep.subr.mxu0 0.0
    %561 = vmatpush2.msra.mxu0 0.0
    %562 = vmatprep.subr.mxu0 0.0
    %563 = vmatpush2.msra.mxu0 0.0
    %564 = vmatprep.subr.mxu0 0.0
    %565 = vmatpush2.msra.mxu0 0.0
    %566 = vmatprep.subr.mxu0 0.0
    %567 = vmatpush2.msra.mxu0 0.0
    %568 = vmatprep.subr.mxu0 0.0
    %569 = vmatpush2.msra.mxu0 0.0
    %570 = vmatprep.subr.mxu0 0.0
    %571 = vmatpush2.msra.mxu0 0.0
    %572 = vmatprep.subr.mxu0 0.0
    %573 = vmatpush2.msra.mxu0 0.0
    %574 = vmatprep.mubr.f32.mxu0 0.0
    %575 = vmatmul.mubr.f32.gmra.mxu0 %v66
    %v576 = vpop.f32.mrf.mxu0
    %v577 = vadd.f32 %v60, %v576
    %v578 = vpop.f32.mrf.mxu0
    %v579 = vadd.f32 %v60, %v578
    %580 = vdwg.mxu0
    %vm581 = vcmp.gt.f32.partialorder %v577, 0.0
    %vm582 = vcmp.gt.f32.partialorder %v579, 0.0
    %v583 = vmul.f32 %v577, 0.2
    %v584 = vmul.f32 %v579, 0.2
    %v585 = vsel %vm581, %v577, %v583
    %v586 = vsel %vm582, %v579, %v584
    %v588 = vsel %vm159, %v585, 0
    %v591 = vsel %vm159, %v586, 0
    %593 = vmatprep.subr.mxu0 0.0
    %594 = vmatpush1.msra.mxu0 0.0
    %595 = vmatprep.subr.mxu0 0.0
    %596 = vmatpush1.msra.mxu0 0.0
    %597 = vmatprep.subr.mxu0 0.0
    %598 = vmatpush1.msra.mxu0 0.0
    %599 = vmatprep.subr.mxu0 0.0
    %600 = vmatpush1.msra.mxu0 0.0
    %601 = vmatprep.subr.mxu0 0.0
    %602 = vmatpush1.msra.mxu0 0.0
    %603 = vmatprep.subr.mxu0 0.0
    %604 = vmatpush1.msra.mxu0 0.0
    %605 = vmatprep.subr.mxu0 0.0
    %606 = vmatpush1.msra.mxu0 0.0
    %607 = vmatprep.subr.mxu0 0.0
    %608 = vmatpush1.msra.mxu0 0.0
    %609 = vmatprep.subr.mxu0 0.0
    %610 = vmatpush1.msra.mxu0 0.0
    %611 = vmatprep.subr.mxu0 0.0
    %612 = vmatpush1.msra.mxu0 0.0
    %613 = vmatprep.subr.mxu0 0.0
    %614 = vmatpush1.msra.mxu0 0.0
    %615 = vmatprep.subr.mxu0 0.0
    %616 = vmatpush1.msra.mxu0 0.0
    %617 = vmatprep.subr.mxu0 0.0
    %618 = vmatpush1.msra.mxu0 0.0
    %619 = vmatprep.subr.mxu0 0.0
    %620 = vmatpush1.msra.mxu0 0.0
    %621 = vmatprep.subr.mxu0 0.0
    %622 = vmatpush1.msra.mxu0 0.0
    %623 = vmatprep.subr.mxu0 %v591
    %624 = vmatpush1.msra.mxu0 %v588
    %625 = vmatprep.subr.mxu0 0.0
    %626 = vmatpush2.msra.mxu0 0.0
    %627 = vmatprep.subr.mxu0 0.0
    %628 = vmatpush2.msra.mxu0 0.0
    %629 = vmatprep.subr.mxu0 0.0
    %630 = vmatpush2.msra.mxu0 0.0
    %631 = vmatprep.subr.mxu0 0.0
    %632 = vmatpush2.msra.mxu0 0.0
    %633 = vmatprep.subr.mxu0 0.0
    %634 = vmatpush2.msra.mxu0 0.0
    %635 = vmatprep.subr.mxu0 0.0
    %636 = vmatpush2.msra.mxu0 0.0
    %637 = vmatprep.subr.mxu0 0.0
    %638 = vmatpush2.msra.mxu0 0.0
    %639 = vmatprep.subr.mxu0 0.0
    %640 = vmatpush2.msra.mxu0 0.0
    %641 = vmatprep.subr.mxu0 0.0
    %642 = vmatpush2.msra.mxu0 0.0
    %643 = vmatprep.subr.mxu0 0.0
    %644 = vmatpush2.msra.mxu0 0.0
    %645 = vmatprep.subr.mxu0 0.0
    %646 = vmatpush2.msra.mxu0 0.0
    %647 = vmatprep.subr.mxu0 0.0
    %648 = vmatpush2.msra.mxu0 0.0
    %649 = vmatprep.subr.mxu0 0.0
    %650 = vmatpush2.msra.mxu0 0.0
    %651 = vmatprep.subr.mxu0 0.0
    %652 = vmatpush2.msra.mxu0 0.0
    %653 = vmatprep.subr.mxu0 0.0
    %654 = vmatpush2.msra.mxu0 0.0
    %655 = vmatprep.subr.mxu0 0.0
    %656 = vmatpush2.msra.mxu0 0.0
    %657 = vmatprep.mubr.f32.mxu0 0.0
    %658 = vmatmul.mubr.f32.gmra.mxu0 %v157
    %v659 = vpop.f32.mrf.mxu0
    %v660 = vadd.f32 %v153, %v659
    %v661 = vpop.f32.mrf.mxu0
    %v662 = vadd.f32 %v153, %v661
    %663 = vdwg.mxu0
    %vm664 = vcmp.gt.f32.partialorder %v660, 0.0
    %vm665 = vcmp.gt.f32.partialorder %v662, 0.0
    %v666 = vmul.f32 %v660, 0.2
    %v667 = vmul.f32 %v662, 0.2
    %v668 = vsel %vm664, %v660, %v666
    %v669 = vsel %vm665, %v662, %v667
    %670 = vmatprep.subr.mxu0 0.0
    %671 = vmatpush1.msra.mxu0 0.0
    %672 = vmatprep.subr.mxu0 0.0
    %673 = vmatpush1.msra.mxu0 0.0
    %674 = vmatprep.subr.mxu0 0.0
    %675 = vmatpush1.msra.mxu0 0.0
    %676 = vmatprep.subr.mxu0 0.0
    %677 = vmatpush1.msra.mxu0 0.0
    %678 = vmatprep.subr.mxu0 0.0
    %679 = vmatpush1.msra.mxu0 0.0
    %680 = vmatprep.subr.mxu0 0.0
    %681 = vmatpush1.msra.mxu0 0.0
    %682 = vmatprep.subr.mxu0 0.0
    %683 = vmatpush1.msra.mxu0 0.0
    %684 = vmatprep.subr.mxu0 0.0
    %685 = vmatpush1.msra.mxu0 0.0
    %686 = vmatprep.subr.mxu0 0.0
    %687 = vmatpush1.msra.mxu0 0.0
    %688 = vmatprep.subr.mxu0 0.0
    %689 = vmatpush1.msra.mxu0 0.0
    %690 = vmatprep.subr.mxu0 0.0
    %691 = vmatpush1.msra.mxu0 0.0
    %692 = vmatprep.subr.mxu0 0.0
    %693 = vmatpush1.msra.mxu0 0.0
    %694 = vmatprep.subr.mxu0 0.0
    %695 = vmatpush1.msra.mxu0 0.0
    %696 = vmatprep.subr.mxu0 0.0
    %697 = vmatpush1.msra.mxu0 0.0
    %698 = vmatprep.subr.mxu0 0.0
    %699 = vmatpush1.msra.mxu0 0.0
    %700 = vmatprep.subr.mxu0 %v669
    %701 = vmatpush1.msra.mxu0 %v668
    %702 = vmatprep.subr.mxu0 0.0
    %703 = vmatpush2.msra.mxu0 0.0
    %704 = vmatprep.subr.mxu0 0.0
    %705 = vmatpush2.msra.mxu0 0.0
    %706 = vmatprep.subr.mxu0 0.0
    %707 = vmatpush2.msra.mxu0 0.0
    %708 = vmatprep.subr.mxu0 0.0
    %709 = vmatpush2.msra.mxu0 0.0
    %710 = vmatprep.subr.mxu0 0.0
    %711 = vmatpush2.msra.mxu0 0.0
    %712 = vmatprep.subr.mxu0 0.0
    %713 = vmatpush2.msra.mxu0 0.0
    %714 = vmatprep.subr.mxu0 0.0
    %715 = vmatpush2.msra.mxu0 0.0
    %716 = vmatprep.subr.mxu0 0.0
    %717 = vmatpush2.msra.mxu0 0.0
    %718 = vmatprep.subr.mxu0 0.0
    %719 = vmatpush2.msra.mxu0 0.0
    %720 = vmatprep.subr.mxu0 0.0
    %721 = vmatpush2.msra.mxu0 0.0
    %722 = vmatprep.subr.mxu0 0.0
    %723 = vmatpush2.msra.mxu0 0.0
    %724 = vmatprep.subr.mxu0 0.0
    %725 = vmatpush2.msra.mxu0 0.0
    %726 = vmatprep.subr.mxu0 0.0
    %727 = vmatpush2.msra.mxu0 0.0
    %728 = vmatprep.subr.mxu0 0.0
    %729 = vmatpush2.msra.mxu0 0.0
    %730 = vmatprep.subr.mxu0 0.0
    %731 = vmatpush2.msra.mxu0 0.0
    %732 = vmatprep.subr.mxu0 0.0
    %733 = vmatpush2.msra.mxu0 0.0
    %734 = vmatprep.mubr.f32.mxu0 0.0
    %735 = vmatmul.mubr.f32.gmra.mxu0 %v265
    %v736 = vpop.f32.mrf.mxu0
    %v737 = vadd.f32 %v246, %v736
    %v738 = vpop.f32.mrf.mxu0
    %v739 = vadd.f32 %v246, %v738
    %740 = vmatprep.mubr.f32.mxu0 0.0
    %741 = vmatmul.mubr.f32.gmra.mxu0 %v268
    %v742 = vpop.f32.mrf.mxu0
    %v743 = vadd.f32 %v251, %v742
    %v744 = vpop.f32.mrf.mxu0
    %v745 = vadd.f32 %v251, %v744
    %746 = vmatprep.mubr.f32.mxu0 0.0
    %747 = vmatmul.mubr.f32.gmra.mxu0 %v271
    %v748 = vpop.f32.mrf.mxu0
    %v749 = vadd.f32 %v256, %v748
    %v750 = vpop.f32.mrf.mxu0
    %v751 = vadd.f32 %v256, %v750
    %752 = vmatprep.mubr.f32.mxu0 0.0
    %753 = vmatmul.mubr.f32.gmra.mxu0 %v274
    %v754 = vpop.f32.mrf.mxu0
    %v755 = vadd.f32 %v261, %v754
    %v756 = vpop.f32.mrf.mxu0
    %v757 = vadd.f32 %v261, %v756
    %758 = vdwg.mxu0
    %s759 = scalar_lea.vmem [#allocation2], 64
    %760 = vst [vmem:[%s759] sm:$0xff] %v737
    %761 = vst [vmem:[%s759 + $0x8] sm:$0xff] %v739
    %762 = vst [vmem:[%s759 + $0x10] sm:$0xff] %v743
    %763 = vst [vmem:[%s759 + $0x18] sm:$0xff] %v745
    %764 = vst [vmem:[%s759 + $0x20] sm:$0xff] %v749
    %765 = vst [vmem:[%s759 + $0x28] sm:$0xff] %v751
    %766 = vst [vmem:[%s759 + $0x30] sm:$0xff] %v755
    %767 = vst [vmem:[%s759 + $0x38] sm:$0xff] %v757
    %768 = vmatprep.subr.mxu0 0.0
    %769 = vmatpush1.msra.mxu0 0.0
    %770 = vmatprep.subr.mxu0 0.0
    %771 = vmatpush1.msra.mxu0 0.0
    %772 = vmatprep.subr.mxu0 0.0
    %773 = vmatpush1.msra.mxu0 0.0
    %774 = vmatprep.subr.mxu0 0.0
    %775 = vmatpush1.msra.mxu0 0.0
    %776 = vmatprep.subr.mxu0 0.0
    %777 = vmatpush1.msra.mxu0 0.0
    %778 = vmatprep.subr.mxu0 0.0
    %779 = vmatpush1.msra.mxu0 0.0
    %780 = vmatprep.subr.mxu0 0.0
    %781 = vmatpush1.msra.mxu0 0.0
    %782 = vmatprep.subr.mxu0 0.0
    %783 = vmatpush1.msra.mxu0 0.0
    %784 = vmatprep.subr.mxu0 0.0
    %785 = vmatpush1.msra.mxu0 0.0
    %786 = vmatprep.subr.mxu0 0.0
    %787 = vmatpush1.msra.mxu0 0.0
    %788 = vmatprep.subr.mxu0 0.0
    %789 = vmatpush1.msra.mxu0 0.0
    %790 = vmatprep.subr.mxu0 0.0
    %791 = vmatpush1.msra.mxu0 0.0
    %792 = vmatprep.subr.mxu0 0.0
    %793 = vmatpush1.msra.mxu0 0.0
    %794 = vmatprep.subr.mxu0 0.0
    %795 = vmatpush1.msra.mxu0 0.0
    %796 = vmatprep.subr.mxu0 0.0
    %797 = vmatpush1.msra.mxu0 0.0
    %798 = vmatprep.subr.mxu0 %v669
    %799 = vmatpush1.msra.mxu0 %v668
    %800 = vmatprep.subr.mxu0 0.0
    %801 = vmatpush2.msra.mxu0 0.0
    %802 = vmatprep.subr.mxu0 0.0
    %803 = vmatpush2.msra.mxu0 0.0
    %804 = vmatprep.subr.mxu0 0.0
    %805 = vmatpush2.msra.mxu0 0.0
    %806 = vmatprep.subr.mxu0 0.0
    %807 = vmatpush2.msra.mxu0 0.0
    %808 = vmatprep.subr.mxu0 0.0
    %809 = vmatpush2.msra.mxu0 0.0
    %810 = vmatprep.subr.mxu0 0.0
    %811 = vmatpush2.msra.mxu0 0.0
    %812 = vmatprep.subr.mxu0 0.0
    %813 = vmatpush2.msra.mxu0 0.0
    %814 = vmatprep.subr.mxu0 0.0
    %815 = vmatpush2.msra.mxu0 0.0
    %816 = vmatprep.subr.mxu0 0.0
    %817 = vmatpush2.msra.mxu0 0.0
    %818 = vmatprep.subr.mxu0 0.0
    %819 = vmatpush2.msra.mxu0 0.0
    %820 = vmatprep.subr.mxu0 0.0
    %821 = vmatpush2.msra.mxu0 0.0
    %822 = vmatprep.subr.mxu0 0.0
    %823 = vmatpush2.msra.mxu0 0.0
    %824 = vmatprep.subr.mxu0 0.0
    %825 = vmatpush2.msra.mxu0 0.0
    %826 = vmatprep.subr.mxu0 0.0
    %827 = vmatpush2.msra.mxu0 0.0
    %828 = vmatprep.subr.mxu0 0.0
    %829 = vmatpush2.msra.mxu0 0.0
    %830 = vmatprep.subr.mxu0 0.0
    %831 = vmatpush2.msra.mxu0 0.0
    %832 = vmatprep.mubr.f32.mxu0 0.0
    %833 = vmatmul.mubr.f32.gmra.mxu0 %v394
    %v834 = vpop.f32.mrf.mxu0
    %v835 = vadd.f32 %v376, %v834
    %v836 = vpop.f32.mrf.mxu0
    %v837 = vadd.f32 %v376, %v836
    %838 = vmatprep.mubr.f32.mxu0 0.0
    %839 = vmatmul.mubr.f32.gmra.mxu0 %v397
    %v840 = vpop.f32.mrf.mxu0
    %v841 = vadd.f32 %v381, %v840
    %v842 = vpop.f32.mrf.mxu0
    %v843 = vadd.f32 %v381, %v842
    %844 = vmatprep.mubr.f32.mxu0 0.0
    %845 = vmatmul.mubr.f32.gmra.mxu0 %v400
    %v846 = vpop.f32.mrf.mxu0
    %v847 = vadd.f32 %v386, %v846
    %v848 = vpop.f32.mrf.mxu0
    %v849 = vadd.f32 %v386, %v848
    %850 = vmatprep.mubr.f32.mxu0 0.0
    %851 = vmatmul.mubr.f32.gmra.mxu0 %v403
    %v852 = vpop.f32.mrf.mxu0
    %v853 = vadd.f32 %v391, %v852
    %v854 = vpop.f32.mrf.mxu0
    %v855 = vadd.f32 %v391, %v854
    %856 = vdwg.mxu0
    %s857 = scalar_lea.vmem [#allocation4], 64
    %858 = vst [vmem:[%s857] sm:$0xff] %v835
    %859 = vst [vmem:[%s857 + $0x8] sm:$0xff] %v837
    %860 = vst [vmem:[%s857 + $0x10] sm:$0xff] %v841
    %861 = vst [vmem:[%s857 + $0x18] sm:$0xff] %v843
    %862 = vst [vmem:[%s857 + $0x20] sm:$0xff] %v847
    %863 = vst [vmem:[%s857 + $0x28] sm:$0xff] %v849
    %864 = vst [vmem:[%s857 + $0x30] sm:$0xff] %v853
    %865 = vst [vmem:[%s857 + $0x38] sm:$0xff] %v855
    // Predicated region
    $region38: #{tpu_custom_call.1} parent=1 // pred_check
      _
    $region39: #{tpu_custom_call.1} parent=1 // pred_check_branch
      %867 = sbr.rel (0) target = $region41
    $region40: #{tpu_custom_call.1} parent=1 // pred_region
      %s869 = ssub.s32 2048, 2048
      %870 = vsyncadd [#allocation3], %s869
      %s871 = sshll.u32 [#allocation2], 4
      %s872 = int_to_ptr.vmem [resolvable:$true] %s871
      %877 = dma.vmem_to_hbm [thread:$0]  %s872, 2048, %s9, [#allocation3], 256, 256, 16
    $region41: #{tpu_custom_call.1} parent=1 // pred_fallthru
      _
    // Predicated region
    $region42: #{tpu_custom_call.1} parent=1 // pred_check
      _
    $region43: #{tpu_custom_call.1} parent=1 // pred_check_branch
      %879 = sbr.rel (0) target = $region45
    $region44: #{tpu_custom_call.1} parent=1 // pred_region
      %s881 = ssub.s32 2048, 2048
      %882 = vsyncadd [#allocation5], %s881
      %s883 = sshll.u32 [#allocation4], 4
      %s884 = int_to_ptr.vmem [resolvable:$true] %s883
      %889 = dma.vmem_to_hbm [thread:$0]  %s884, 2048, %s10, [#allocation5], 256, 256, 16
    $region45: #{tpu_custom_call.1} parent=1 // pred_fallthru
      _
    // Predicated region
    $region46: #{tpu_custom_call.1} parent=1 // pred_check
      _
    $region47: #{tpu_custom_call.1} parent=1 // pred_check_branch
      %891 = sbr.rel (0) target = $region49
    $region48: #{tpu_custom_call.1} parent=1 // pred_region
      %892 = dma.done [#allocation3], 2048
    $region49: #{tpu_custom_call.1} parent=1 // pred_fallthru
      _
    // Predicated region
    $region50: #{tpu_custom_call.1} parent=1 // pred_check
      _
    $region51: #{tpu_custom_call.1} parent=1 // pred_check_branch
      %894 = sbr.rel (0) target = $region53
    $region52: #{tpu_custom_call.1} parent=1 // pred_region
      %895 = dma.done [#allocation5], 2048
    $region53: #{tpu_custom_call.1} parent=1 // pred_fallthru
      _
    %896 = vsyncpa [#allocation3], 1
    %897 = vsyncpa [#allocation5], 1

</llo_original>
